<compile_context>
chip_gen: v5e
topology: v5e:2x2
jax: 0.10.0
libtpu: 0.0.40
codegen_flags: <defaults>
</compile_context>

<pallas_src>
import functools

import jax
import jax.numpy as jnp
from jax.experimental import pallas as pl
from jax.experimental.pallas import tpu as pltpu

EPS = 1e-5


def _round_up(a, b):
    return ((a + b - 1) // b) * b


def _vmem_capacity_bytes():
    # Trace-time hardware query; fall back to the smallest per-core VMEM (v7x).
    try:
        cap = int(pltpu.get_tpu_info().vmem_capacity_bytes)
        # Sanity clamp in case the query reports per-chip instead of per-TC.
        return max(32 * 1024 * 1024, min(cap, 128 * 1024 * 1024))
    except Exception:
        return 64 * 1024 * 1024


def _pick_tile_rows(n_rows, d, in_itemsize, out_itemsize, vmem_cap):
    """Largest sublane-dense row tile that fits VMEM, with >= 4 grid steps."""
    # Bytes resident per row per grid step: double-buffered input + output
    # blocks plus roughly one full-tile f32 temporary inside the body.
    per_row = 2 * d * (in_itemsize + out_itemsize) + 2 * d * 4
    budget = int(vmem_cap * 0.6)
    tr = budget // max(per_row, 1)
    tr = max(32, min(2048, tr))
    tr -= tr % 32                          # multiple of 32: dense even for bf16
    tr = min(tr, _round_up(n_rows, 32))    # never (much) bigger than the data
    if n_rows > 64:
        # At least 4 grid steps (even target) so the two TCs on a v7x megacore
        # both get work and the DMA pipeline has something to overlap with.
        steps = max(4, pl.cdiv(n_rows, tr))
        if steps % 2:
            steps += 1
        tr = min(tr, max(32, _round_up(pl.cdiv(n_rows, steps), 32)))
    return int(max(8, tr))


def _layernorm_kernel(x_ref, w_ref, *refs, d, has_bias):
    # x_ref: (TILE_ROWS, D); w_ref (and b_ref if present): (1, D) in input dtype.
    o_ref = refs[-1]
    x = x_ref[...].astype(jnp.float32)
    inv_d = 1.0 / d
    # Single pass: only `x` persists as a full-tile f32 temporary.
    mean = jnp.sum(x, axis=-1, keepdims=True) * inv_d
    mean_sq = jnp.sum(x * x, axis=-1, keepdims=True) * inv_d
    var = jnp.maximum(mean_sq - mean * mean, 0.0)   # guard f32 cancellation
    inv = jax.lax.rsqrt(var + EPS)
    w = w_ref[...].astype(jnp.float32)
    y = (x - mean) * (inv * w)
    if has_bias:
        y = y + refs[0][...].astype(jnp.float32)
    o_ref[...] = y.astype(o_ref.dtype)


@functools.partial(jax.jit, static_argnames=("tile_rows",))
def layer_norm_pallas(x, weight, bias=None, tile_rows=None):
    """x: (..., D); weight: (D,); bias: (D,) or None. Returns x.shape / x.dtype."""
    orig_shape = x.shape
    D = orig_shape[-1]
    x2 = x.reshape(-1, D)
    N = x2.shape[0]
    has_bias = bias is not None

    vmem_cap = _vmem_capacity_bytes()
    if tile_rows is None:
        tile_rows = _pick_tile_rows(
            N, D, x2.dtype.itemsize, x.dtype.itemsize, vmem_cap
        )
    else:
        tile_rows = max(32, _round_up(int(tile_rows), 32))

    # Ragged N handled by Pallas partial-block clipping: the garbage rows in
    # the last (partial) input block are computed and never written back.
    grid = (pl.cdiv(N, tile_rows),)

    inputs = [x2, weight.reshape(1, D)]
    in_specs = [
        pl.BlockSpec((tile_rows, D), lambda i: (i, 0)),
        pl.BlockSpec((1, D), lambda i: (0, 0)),       # weight: resident
    ]
    if has_bias:
        inputs.append(bias.reshape(1, D))
        in_specs.append(pl.BlockSpec((1, D), lambda i: (0, 0)))  # bias: resident

    kernel = functools.partial(_layernorm_kernel, d=D, has_bias=has_bias)

    out = pl.pallas_call(
        kernel,
        out_shape=jax.ShapeDtypeStruct((N, D), x.dtype),
        grid_spec=pltpu.PrefetchScalarGridSpec(
            num_scalar_prefetch=0,
            grid=grid,
            in_specs=in_specs,
            out_specs=pl.BlockSpec((tile_rows, D), lambda i: (i, 0)),
        ),
        compiler_params=pltpu.CompilerParams(
            dimension_semantics=("parallel",),
            vmem_limit_bytes=int(min(vmem_cap * 0.75, 128 * 1024 * 1024)),
        ),
    )(*inputs)

    return out.reshape(orig_shape)


def make_layernorm_params(ndim, bias=True):
    # Matches torch LayerNorm init: weight=ones, bias=zeros (None if bias=False).
    weight = jnp.ones((ndim,), dtype=jnp.float32)
    b = jnp.zeros((ndim,), dtype=jnp.float32) if bias else None
    return weight, b


def _ref_layernorm(x, weight, bias):
    mean = jnp.mean(x, axis=-1, keepdims=True)
    var = jnp.mean((x - mean) ** 2, axis=-1, keepdims=True)
    y = (x - mean) / jnp.sqrt(var + EPS) * weight
    if bias is not None:
        y = y + bias
    return y


if __name__ == "__main__":
    key = jax.random.PRNGKey(0)
    batch, seq, hidden = 2, 8, 32  # (B, T, C) as in the GPT residual stream
    x = jax.random.normal(key, (batch, seq, hidden), dtype=jnp.float32)

    weight, bias = make_layernorm_params(hidden, bias=True)
    # Perturb so the affine part is actually exercised (deterministic).
    kw, kb = jax.random.split(jax.random.PRNGKey(1))
    weight = weight + 0.1 * jax.random.normal(kw, (hidden,), jnp.float32)
    bias = bias + 0.1 * jax.random.normal(kb, (hidden,), jnp.float32)

    y = jax.block_until_ready(layer_norm_pallas(x, weight, bias))
    ref = _ref_layernorm(x, weight, bias)
    assert jnp.allclose(y, ref, atol=1e-4, rtol=1e-4), "mismatch vs reference"

    # bias=False path + ragged row count + lane-aligned feature dim.
    x2 = jax.random.normal(jax.random.PRNGKey(2), (3, 5, 128), dtype=jnp.float32)
    w2, b2 = make_layernorm_params(128, bias=False)
    y2 = jax.block_until_ready(layer_norm_pallas(x2, w2, b2))
    ref2 = _ref_layernorm(x2, w2, b2)
    assert jnp.allclose(y2, ref2, atol=1e-4, rtol=1e-4), "mismatch vs reference (no-bias)"

    # Multi-step grid with a partial last block and a non-multiple-of-128 D.
    x3 = jax.random.normal(jax.random.PRNGKey(3), (4, 37, 96), dtype=jnp.float32)
    w3, b3 = make_layernorm_params(96, bias=True)
    y3 = jax.block_until_ready(layer_norm_pallas(x3, w3, b3, tile_rows=64))
    ref3 = _ref_layernorm(x3, w3, b3)
    assert jnp.allclose(y3, ref3, atol=1e-4, rtol=1e-4), "mismatch vs reference (ragged)"

    print("KERNEL_OK")
</pallas_src>

<mosaic_0001>
module attributes {stable_mosaic.version = 11 : i64} {
  func.func @_layernorm_kernel(%arg0: i32, %arg1: memref<32x32xf32, #tpu.memory_space<vmem>>, %arg2: memref<1x32xf32, #tpu.memory_space<vmem>>, %arg3: memref<1x32xf32, #tpu.memory_space<vmem>>, %arg4: memref<32x32xf32, #tpu.memory_space<vmem>>) attributes {dimension_semantics = [#tpu.dimension_semantics<parallel>], iteration_bounds = array<i64: 1>, scalar_prefetch = 0 : i64, scratch_operands = 0 : i64, tpu.core_type = #tpu.core_type<tc>, window_params = [{transform_indices = @transform_0, window_bounds = array<i64: 32, 32>}, {pipeline_mode = #tpu.pipeline_mode<synchronous>, transform_indices = @transform_1, window_bounds = array<i64: 1, 32>}, {pipeline_mode = #tpu.pipeline_mode<synchronous>, transform_indices = @transform_2, window_bounds = array<i64: 1, 32>}, {transform_indices = @transform_3, window_bounds = array<i64: 32, 32>}]} {
    %c0 = arith.constant 0 : index
    %c0_0 = arith.constant 0 : index
    %0 = vector.load %arg1[%c0, %c0_0] : memref<32x32xf32, #tpu.memory_space<vmem>>, vector<32x32xf32>
    %cst = arith.constant dense<0.000000e+00> : vector<32xf32>
    %1 = vector.multi_reduction <add>, %0, %cst [1] : vector<32x32xf32> to vector<32xf32>
    %2 = vector.shape_cast %1 : vector<32xf32> to vector<32x1xf32>
    %cst_1 = arith.constant 3.125000e-02 : f32
    %3 = vector.broadcast %cst_1 : f32 to vector<32x1xf32>
    %4 = arith.mulf %2, %3 : vector<32x1xf32>
    %5 = arith.mulf %0, %0 : vector<32x32xf32>
    %cst_2 = arith.constant dense<0.000000e+00> : vector<32xf32>
    %6 = vector.multi_reduction <add>, %5, %cst_2 [1] : vector<32x32xf32> to vector<32xf32>
    %7 = vector.shape_cast %6 : vector<32xf32> to vector<32x1xf32>
    %cst_3 = arith.constant 3.125000e-02 : f32
    %8 = vector.broadcast %cst_3 : f32 to vector<32x1xf32>
    %9 = arith.mulf %7, %8 : vector<32x1xf32>
    %10 = arith.mulf %4, %4 : vector<32x1xf32>
    %11 = arith.subf %9, %10 : vector<32x1xf32>
    %cst_4 = arith.constant 0.000000e+00 : f32
    %12 = vector.broadcast %cst_4 : f32 to vector<32x1xf32>
    %13 = arith.maximumf %11, %12 : vector<32x1xf32>
    %cst_5 = arith.constant 9.99999974E-6 : f32
    %14 = vector.broadcast %cst_5 : f32 to vector<32x1xf32>
    %15 = arith.addf %13, %14 : vector<32x1xf32>
    %16 = math.rsqrt %15 : vector<32x1xf32>
    %c0_6 = arith.constant 0 : index
    %c0_7 = arith.constant 0 : index
    %17 = vector.load %arg2[%c0_6, %c0_7] : memref<1x32xf32, #tpu.memory_space<vmem>>, vector<1x32xf32>
    %18 = vector.broadcast %4 : vector<32x1xf32> to vector<32x32xf32>
    %19 = arith.subf %0, %18 : vector<32x32xf32>
    %20 = vector.broadcast %16 : vector<32x1xf32> to vector<32x32xf32>
    %21 = vector.broadcast %17 : vector<1x32xf32> to vector<32x32xf32>
    %22 = arith.mulf %20, %21 : vector<32x32xf32>
    %23 = arith.mulf %19, %22 : vector<32x32xf32>
    %c0_8 = arith.constant 0 : index
    %c0_9 = arith.constant 0 : index
    %24 = vector.load %arg3[%c0_8, %c0_9] : memref<1x32xf32, #tpu.memory_space<vmem>>, vector<1x32xf32>
    %25 = vector.broadcast %24 : vector<1x32xf32> to vector<32x32xf32>
    %26 = arith.addf %23, %25 : vector<32x32xf32>
    %c0_10 = arith.constant 0 : index
    %c0_11 = arith.constant 0 : index
    %27 = vector.load %arg4[%c0_10, %c0_11] : memref<32x32xf32, #tpu.memory_space<vmem>>, vector<32x32xf32>
    tpu.vector_store %arg4[%c0_10, %c0_11], %26 {strides = array<i32>} : memref<32x32xf32, #tpu.memory_space<vmem>>, vector<32x32xf32>,
    return
  }
  func.func @transform_0(%arg0: i32) -> (i32, i32) {
    %c0_i32 = arith.constant 0 : i32
    %c0_i32_0 = arith.constant 0 : i32
    return %arg0, %c0_i32 : i32, i32
  }
  func.func @transform_1(%arg0: i32) -> (i32, i32) {
    %c0_i32 = arith.constant 0 : i32
    %c0_i32_0 = arith.constant 0 : i32
    %c0_i32_1 = arith.constant 0 : i32
    return %c0_i32, %c0_i32_0 : i32, i32
  }
  func.func @transform_2(%arg0: i32) -> (i32, i32) {
    %c0_i32 = arith.constant 0 : i32
    %c0_i32_0 = arith.constant 0 : i32
    %c0_i32_1 = arith.constant 0 : i32
    return %c0_i32, %c0_i32_0 : i32, i32
  }
  func.func @transform_3(%arg0: i32) -> (i32, i32) {
    %c0_i32 = arith.constant 0 : i32
    %c0_i32_0 = arith.constant 0 : i32
    return %arg0, %c0_i32 : i32, i32
  }
}

</mosaic_0001>

<llo_original>
// kernel: layer_norm_pallas.1
$region0: #{layer_norm_pallas.1}
  #allocation0 [shape = 'u32[]', space=smem, size = 0x4, offset = 0x4, fixed_abs, tag = 'smem constant byte address 0x4 - core index']
  #allocation1 [shape = 'u32[72,128]{1,0:T(1,128)}', space=vmem, size = 0x9000, scoped, tag = 'internal scratch']
  %s0 = inlined_call_operand.hbm [shape: f32[16,32], index: 0, kind: input, shape index: {}]
  %s1 = inlined_call_operand.vmem [shape: f32[1,32], index: 1, kind: input, shape index: {}]
  %s2 = inlined_call_operand.vmem [shape: f32[1,32], index: 2, kind: input, shape index: {}]
  %s3 = inlined_call_operand.hbm [shape: f32[16,32], index: 3, kind: output, shape index: {}]
  %s4 = sld [smem:[#allocation0]]
  $region26: #{layer_norm_pallas.1} parent=0
    _
  %s6 = ssub.s32 1, %s4
  %s7 = scalar_select 0, %s6, %s4
  $region1: #{layer_norm_pallas.1} parent=0
    #allocation2 [shape = 'u8[16384]{0}', space=vmem, size = 0x4000, scoped, tag = 'input window, operand 0, single buffered']
    #allocation3 [shape = 's32[1]{0}', space=sflag, size = 0x4, scoped, tag = 'scoped memory for layer_norm_pallas.1']
    #allocation4 [shape = 's32[1]{0}', space=sflag, size = 0x4, scoped, tag = 'scoped memory for layer_norm_pallas.1']
    #allocation5 [shape = 'u8[16384]{0}', space=vmem, size = 0x4000, scoped, tag = 'output window, operand 0, single buffered']
    %8 = vsyncpa [#allocation3], 0
    %9 = vsyncpa [#allocation4], 0
    // Predicated region
    $region2: #{layer_norm_pallas.1} parent=1 // pred_check
      _
    $region3: #{layer_norm_pallas.1} parent=1 // pred_check_branch
      %11 = sbr.rel (0) target = $region5
    $region4: #{layer_norm_pallas.1} parent=1 // pred_region
      %13 = vsyncadd [#allocation3], 256
      %s14 = sshll.u32 %s0, 4
      %s15 = int_to_ptr.hbm [resolvable:$true] %s14
      %s16 = sshll.u32 [#allocation2], 4
      %s17 = int_to_ptr.vmem [resolvable:$true] %s16
      %22 = dma.hbm_to_vmem [thread:$0]  %s15, 256, %s17, [#allocation3], 128, 128, 8
    $region5: #{layer_norm_pallas.1} parent=1 // pred_fallthru
      _
    // Predicated region
    $region6: #{layer_norm_pallas.1} parent=1 // pred_check
      _
    $region7: #{layer_norm_pallas.1} parent=1 // pred_check_branch
      %24 = sbr.rel (0) target = $region9
    $region8: #{layer_norm_pallas.1} parent=1 // pred_region
      _
    $region9: #{layer_norm_pallas.1} parent=1 // pred_fallthru
      _
    // Predicated region
    $region10: #{layer_norm_pallas.1} parent=1 // pred_check
      _
    $region11: #{layer_norm_pallas.1} parent=1 // pred_check_branch
      %26 = sbr.rel (0) target = $region13
    $region12: #{layer_norm_pallas.1} parent=1 // pred_region
      _
    $region13: #{layer_norm_pallas.1} parent=1 // pred_fallthru
      _
    // Predicated region
    $region14: #{layer_norm_pallas.1} parent=1 // pred_check
      _
    $region15: #{layer_norm_pallas.1} parent=1 // pred_check_branch
      %28 = sbr.rel (0) target = $region17
    $region16: #{layer_norm_pallas.1} parent=1 // pred_region
      %30 = dma.done [#allocation3], 512
    $region17: #{layer_norm_pallas.1} parent=1 // pred_fallthru
      _
    %v31 = vld [vmem:[#allocation2] sm:$0xff]
    %v32 = vld [vmem:[#allocation2 + $0x8] sm:$0xff]
    %v33 = vld [vmem:[#allocation2 + $0x10] sm:$0xff]
    %v34 = vld [vmem:[#allocation2 + $0x18] sm:$0xff]
    %vm35 = vcmask 261120
    %v36 = vsel %vm35, %v31, 0.0
    %37 = vadd.xlane.f32.xlu0 %v36
    %v38 = vpop.xlane.xlu0 %37
    %v39 = vsel %vm35, %v32, 0.0
    %40 = vadd.xlane.f32.xlu0 %v39
    %v41 = vpop.xlane.xlu0 %40
    %v42 = vsel %vm35, %v33, 0.0
    %43 = vadd.xlane.f32.xlu0 %v42
    %v44 = vpop.xlane.xlu0 %43
    %v45 = vsel %vm35, %v34, 0.0
    %46 = vadd.xlane.f32.xlu0 %v45
    %v47 = vpop.xlane.xlu0 %46
    %v48 = vmul.f32 %v38, 0.03125
    %v49 = vmul.f32 %v41, 0.03125
    %v50 = vmul.f32 %v44, 0.03125
    %v51 = vmul.f32 %v47, 0.03125
    %v52 = vmul.f32 %v31, %v31
    %v53 = vmul.f32 %v32, %v32
    %v54 = vmul.f32 %v33, %v33
    %v55 = vmul.f32 %v34, %v34
    %v56 = vsel %vm35, %v52, 0.0
    %57 = vadd.xlane.f32.xlu0 %v56
    %v58 = vpop.xlane.xlu0 %57
    %v59 = vsel %vm35, %v53, 0.0
    %60 = vadd.xlane.f32.xlu0 %v59
    %v61 = vpop.xlane.xlu0 %60
    %v62 = vsel %vm35, %v54, 0.0
    %63 = vadd.xlane.f32.xlu0 %v62
    %v64 = vpop.xlane.xlu0 %63
    %v65 = vsel %vm35, %v55, 0.0
    %66 = vadd.xlane.f32.xlu0 %v65
    %v67 = vpop.xlane.xlu0 %66
    %v68 = vmul.f32 %v58, 0.03125
    %v69 = vmul.f32 %v61, 0.03125
    %v70 = vmul.f32 %v64, 0.03125
    %v71 = vmul.f32 %v67, 0.03125
    %v72 = vmul.f32 %v48, %v48
    %v73 = vmul.f32 %v49, %v49
    %v74 = vmul.f32 %v50, %v50
    %v75 = vmul.f32 %v51, %v51
    %v76 = vsub.f32 %v68, %v72
    %v77 = vsub.f32 %v69, %v73
    %v78 = vsub.f32 %v70, %v74
    %v79 = vsub.f32 %v71, %v75
    %v80 = vmax.f32 %v76, 0.0
    %v81 = vmax.f32 %v77, 0.0
    %v82 = vmax.f32 %v78, 0.0
    %v83 = vmax.f32 %v79, 0.0
    %v84 = vadd.f32 %v80, 1e-05
    %v85 = vadd.f32 %v81, 1e-05
    %v86 = vadd.f32 %v82, 1e-05
    %v87 = vadd.f32 %v83, 1e-05
    %v88 = vrsqrt.pop %v84
    %v89 = vmul.f32 %v88, %v84
    %v90 = vmul.f32 %v89, %v88
    %v91 = vmul.f32 0.5, %v90
    %v92 = vsub.f32 1.5, %v91
    %v93 = vmul.f32 %v88, %v92
    %vm94 = vweird.f32 %v84
    %vm95 = vweird.f32 %v88
    %vm96 = vmor %vm94, %vm95
    %v97 = vsel %vm96, %v88, %v93
    %v98 = vrsqrt.pop %v85
    %v99 = vmul.f32 %v98, %v85
    %v100 = vmul.f32 %v99, %v98
    %v101 = vmul.f32 0.5, %v100
    %v102 = vsub.f32 1.5, %v101
    %v103 = vmul.f32 %v98, %v102
    %vm104 = vweird.f32 %v85
    %vm105 = vweird.f32 %v98
    %vm106 = vmor %vm104, %vm105
    %v107 = vsel %vm106, %v98, %v103
    %v108 = vrsqrt.pop %v86
    %v109 = vmul.f32 %v108, %v86
    %v110 = vmul.f32 %v109, %v108
    %v111 = vmul.f32 0.5, %v110
    %v112 = vsub.f32 1.5, %v111
    %v113 = vmul.f32 %v108, %v112
    %vm114 = vweird.f32 %v86
    %vm115 = vweird.f32 %v108
    %vm116 = vmor %vm114, %vm115
    %v117 = vsel %vm116, %v108, %v113
    %v118 = vrsqrt.pop %v87
    %v119 = vmul.f32 %v118, %v87
    %v120 = vmul.f32 %v119, %v118
    %v121 = vmul.f32 0.5, %v120
    %v122 = vsub.f32 1.5, %v121
    %v123 = vmul.f32 %v118, %v122
    %vm124 = vweird.f32 %v87
    %vm125 = vweird.f32 %v118
    %vm126 = vmor %vm124, %vm125
    %v127 = vsel %vm126, %v118, %v123
    %v128 = vld [vmem:[%s1] sm:$0x1]
    %v129 = vsub.f32 %v31, %v48
    %v130 = vsub.f32 %v32, %v49
    %v131 = vsub.f32 %v33, %v50
    %v132 = vsub.f32 %v34, %v51
    %v134 = vperm.slane %v128, 0
    %v136 = vmul.f32 %v97, %v134
    %v137 = vmul.f32 %v107, %v134
    %v138 = vmul.f32 %v117, %v134
    %v139 = vmul.f32 %v127, %v134
    %v140 = vmul.f32 %v129, %v136
    %v141 = vmul.f32 %v130, %v137
    %v142 = vmul.f32 %v131, %v138
    %v143 = vmul.f32 %v132, %v139
    %v144 = vld [vmem:[%s2] sm:$0x1]
    %v146 = vperm.slane %v144, 0
    %v148 = vadd.f32 %v140, %v146
    %v149 = vadd.f32 %v141, %v146
    %v150 = vadd.f32 %v142, %v146
    %v151 = vadd.f32 %v143, %v146
    %152 = vst.msk [vmem:[#allocation5] sm:$0xff] %vm35, %v148
    %153 = vst.msk [vmem:[#allocation5 + $0x8] sm:$0xff] %vm35, %v149
    %154 = vst.msk [vmem:[#allocation5 + $0x10] sm:$0xff] %vm35, %v150
    %155 = vst.msk [vmem:[#allocation5 + $0x18] sm:$0xff] %vm35, %v151
    // Predicated region
    $region18: #{layer_norm_pallas.1} parent=1 // pred_check
      _
    $region19: #{layer_norm_pallas.1} parent=1 // pred_check_branch
      %157 = sbr.rel (0) target = $region21
    $region20: #{layer_norm_pallas.1} parent=1 // pred_region
      %159 = vsyncadd [#allocation4], 256
      %s160 = sshll.u32 [#allocation5], 4
      %s161 = int_to_ptr.vmem [resolvable:$true] %s160
      %s162 = sshll.u32 %s3, 4
      %s163 = int_to_ptr.hbm [resolvable:$true] %s162
      %168 = dma.vmem_to_hbm [thread:$0]  %s161, 256, %s163, [#allocation4], 128, 128, 8
    $region21: #{layer_norm_pallas.1} parent=1 // pred_fallthru
      _
    // Predicated region
    $region22: #{layer_norm_pallas.1} parent=1 // pred_check
      _
    $region23: #{layer_norm_pallas.1} parent=1 // pred_check_branch
      %170 = sbr.rel (0) target = $region25
    $region24: #{layer_norm_pallas.1} parent=1 // pred_region
      %172 = dma.done [#allocation4], 512
    $region25: #{layer_norm_pallas.1} parent=1 // pred_fallthru
      _
    %173 = vsyncpa [#allocation3], 1
    %174 = vsyncpa [#allocation4], 1

</llo_original>
